<compile_context>
chip_gen: v7x
topology: tpu7x:2x2x1
jax: 0.10.0
libtpu: 0.0.40
codegen_flags: <defaults>
</compile_context>

<pallas_src>
import functools

import jax
import jax.numpy as jnp
from jax.experimental import pallas as pl
from jax.experimental.pallas import tpu as pltpu


def _round_up(a, b):
    return (a + b - 1) // b * b


def _device_config():
    """(tm, tv_pref, vmem_limit_bytes, two_core) per TPU generation."""
    try:
        kind = jax.devices()[0].device_kind.lower()
    except Exception:
        kind = ""
    if "v5" in kind:
        # v5e: lowest HBM BW (~820 GB/s) -> biggest win from fewer passes over
        # W; 128 MiB physical VMEM so tm=512 (bf16 x) fits easily.
        return 512, 256, 64 * 1024 * 1024, False
    if "v6" in kind:
        # v6e: needs ~640 flops/byte to be MXU-bound; tm=1024 halves W re-reads
        # and with bf16 activations fits in ~96 MiB scoped VMEM (128 physical).
        return 1024, 512, 96 * 1024 * 1024, False
    if "v7" in kind:
        # v7x: 64 MiB VMEM per TC, 2 TCs/chip; budget 48 MiB, keep M tiles even.
        return 512, 512, 48 * 1024 * 1024, True
    return 512, 512, 48 * 1024 * 1024, False


def _pick_tv(V, pref):
    """Largest lane-dense multiple of 256 (<= pref) that divides V, else 128, else V."""
    hi = max(256, min(pref, V)) // 256 * 256
    for cand in range(hi, 0, -256):
        if V % cand == 0:
            return cand
    if V % 128 == 0:
        return 128
    return V              # tiny / odd V: block == full dim is always legal


def _clamp_tm_for_vmem(tm, tv, H, vmem_limit, out_itemsize):
    """Shrink tm until the double-buffered working set fits the scoped VMEM limit."""
    def need(tm_):
        return (2 * tm_ * H * 2          # x tile (bf16), 2 buffers
                + tm_ * H * 2            # xn scratch (bf16)
                + 2 * H * tv * 2         # W tile (bf16), 2 buffers
                + 2 * tm_ * tv * out_itemsize)  # out tile, 2 buffers
    while tm > 64 and need(tm) > vmem_limit:
        tm //= 2
    return tm


# ---------------------------------------------------------------------------
# Pallas kernel 1: unembed(norm(x)) == RMSNorm(x) @ W        (M,H) @ (H,V)
# ---------------------------------------------------------------------------
def _rmsnorm_unembed_kernel(x_ref, g_ref, w_ref, o_ref, xn_ref, *, eps):
    # Hoist the RMSNorm out of the vocab loop: compute the normalized M tile
    # once (first V step) into a bf16 VMEM scratch, reuse it for every V tile.
    # V is the innermost "arbitrary" axis; only M is split across cores.
    @pl.when(pl.program_id(1) == 0)
    def _():
        x = x_ref[...].astype(jnp.float32)                        # (TM, H)
        var = jnp.mean(x * x, axis=-1, keepdims=True)
        xn = x * jax.lax.rsqrt(var + eps) * g_ref[...].astype(jnp.float32)
        xn_ref[...] = xn.astype(xn_ref.dtype)                     # bf16 MXU feed

    o_ref[...] = jnp.dot(xn_ref[...], w_ref[...],
                         preferred_element_type=jnp.float32).astype(o_ref.dtype)


def rmsnorm_unembed_2d(x2d, gamma, w, *, tm=None, tv=None, eps=1e-5,
                       out_dtype=jnp.bfloat16):
    """RMSNorm(x2d) @ w.  x2d: (M, H), gamma: (H,), w: (H, V) -> (M, V)."""
    M, H = x2d.shape
    V = w.shape[1]

    tm_d, tv_d, vmem_limit, two_core = _device_config()
    tm = tm if tm is not None else tm_d
    tv = _pick_tv(V, tv if tv is not None else tv_d)

    x2d = x2d.astype(jnp.bfloat16)              # halve the x HBM stream + VMEM
    w = w.astype(jnp.bfloat16)                  # no-op when the cached bf16 W is passed
    gamma2d = gamma.reshape(1, H).astype(jnp.float32)

    tm = min(tm, _round_up(M, 8))
    tm = _clamp_tm_for_vmem(tm, tv, H, vmem_limit,
                            out_itemsize=jnp.dtype(out_dtype).itemsize)
    # 2-TC chips (v7x): avoid a single M tile when there is enough work to split.
    if two_core and M > 512 and M <= tm:
        tm = max(256, _round_up((M + 1) // 2, 8))
    Mp = _round_up(M, tm)
    if Mp != M:
        x2d = jnp.pad(x2d, ((0, Mp - M), (0, 0)))

    out = pl.pallas_call(
        functools.partial(_rmsnorm_unembed_kernel, eps=eps),
        out_shape=jax.ShapeDtypeStruct((Mp, V), out_dtype),
        grid=(Mp // tm, V // tv),
        in_specs=[
            pl.BlockSpec((tm, H), lambda i, j: (i, 0)),     # bf16 x: resident across V
            pl.BlockSpec((1, H), lambda i, j: (0, 0)),      # gamma
            pl.BlockSpec((H, tv), lambda i, j: (0, j)),     # bf16 W tile (dominant stream)
        ],
        out_specs=pl.BlockSpec((tm, tv), lambda i, j: (i, j)),
        scratch_shapes=[pltpu.VMEM((tm, H), jnp.bfloat16)],
        compiler_params=pltpu.CompilerParams(
            dimension_semantics=("parallel", "arbitrary"),
            vmem_limit_bytes=vmem_limit),
    )(x2d, gamma2d, w)
    return out[:M] if Mp != M else out


@functools.partial(jax.jit, static_argnames=("eps", "out_dtype"))
def _batched_unembed_decode(block_out, attn_out, intermediate, mlp_out,
                            gamma, w, *, eps, out_dtype):
    """All four decodings in one pallas_call; jitted so concat/cast/pad fuse."""
    B, S, H = block_out.shape
    stacked = jnp.concatenate(
        [t.reshape(B * S, H) for t in (block_out, attn_out, intermediate, mlp_out)],
        axis=0).astype(jnp.bfloat16)                           # (4*B*S, H) bf16
    dec = rmsnorm_unembed_2d(stacked, gamma, w, eps=eps, out_dtype=out_dtype)
    return dec.reshape(4, B, S, dec.shape[-1])


# ---------------------------------------------------------------------------
# Pallas kernel 2: add_vector_after_position fused with the trailing "+ v"
#   out = x + (position_ids > after) * v + v
# ---------------------------------------------------------------------------
def _masked_add_kernel(after_ref, x_ref, v_ref, pos_ref, o_ref):
    after = after_ref[0]
    scale = jnp.where(pos_ref[...] > after, 2.0, 1.0).astype(x_ref.dtype)  # (TR,1)
    o_ref[...] = x_ref[...] + scale * v_ref[...]


_MASKED_ADD_VMEM_BUDGET = 32 * 1024 * 1024   # double-buffered x + out tiles


@jax.jit
def _masked_add_plus(x, v, position_ids, after_arr):
    B, S, H = x.shape
    M = B * S
    x2d = x.reshape(M, H)
    pos2d = position_ids.reshape(M, 1).astype(jnp.int32)
    v2d = v.reshape(1, H).astype(x.dtype)

    itemsize = x.dtype.itemsize
    # 2 buffers for x + 2 for out per row-tile -> tr = budget / (4*H*itemsize),
    # multiple of 8; keeps the kernel near the HBM roofline at any hidden size.
    tr = max(8, (_MASKED_ADD_VMEM_BUDGET // (4 * H * itemsize)) // 8 * 8)
    tr = min(tr, _round_up(M, 8))
    Mp = _round_up(M, tr)
    if Mp != M:
        x2d = jnp.pad(x2d, ((0, Mp - M), (0, 0)))
        pos2d = jnp.pad(pos2d, ((0, Mp - M), (0, 0)))

    out = pl.pallas_call(
        _masked_add_kernel,
        out_shape=jax.ShapeDtypeStruct((Mp, H), x.dtype),
        grid_spec=pltpu.PrefetchScalarGridSpec(
            num_scalar_prefetch=1,
            grid=(Mp // tr,),
            in_specs=[
                pl.BlockSpec((tr, H), lambda i, a: (i, 0)),
                pl.BlockSpec((1, H), lambda i, a: (0, 0)),
                pl.BlockSpec((tr, 1), lambda i, a: (i, 0)),
            ],
            out_specs=pl.BlockSpec((tr, H), lambda i, a: (i, 0)),
        ),
        compiler_params=pltpu.CompilerParams(
            dimension_semantics=("parallel",),
            vmem_limit_bytes=48 * 1024 * 1024),
    )(after_arr, x2d, v2d, pos2d)
    out = out[:M] if Mp != M else out
    return out.reshape(B, S, H)


def add_vector_after_position_plus(x, v, position_ids, after):
    """x: (B,S,H), v: (H,), position_ids: (B,S), after: int or None."""
    if after is None:
        # torch semantics: mask = pos > (min-1) is all-True, then the trailing
        # "+ v" => x + 2*v everywhere.
        after_arr = (jnp.min(position_ids).astype(jnp.int32) - 1).reshape(1)
    else:
        after_arr = jnp.asarray([after], dtype=jnp.int32)
    return _masked_add_plus(x, v, position_ids, after_arr)


# ---------------------------------------------------------------------------
# Synthetic LLaMA-style decoder block (glue, plain JAX).  Stands in for the
# injected `block` dependency; exposes attn activations / post_attention_
# layernorm / mlp exactly as the wrapper needs.
# ---------------------------------------------------------------------------
class SyntheticLlamaBlock:
    def __init__(self, key, hidden, intermediate):
        ks = jax.random.split(key, 7)
        s = 1.0 / jnp.sqrt(hidden)
        self.wq = jax.random.normal(ks[0], (hidden, hidden), jnp.float32) * s
        self.wk = jax.random.normal(ks[1], (hidden, hidden), jnp.float32) * s
        self.wv = jax.random.normal(ks[2], (hidden, hidden), jnp.float32) * s
        self.wo = jax.random.normal(ks[3], (hidden, hidden), jnp.float32) * s
        self.w_gate = jax.random.normal(ks[4], (hidden, intermediate), jnp.float32) * s
        self.w_up = jax.random.normal(ks[5], (hidden, intermediate), jnp.float32) * s
        self.w_down = jax.random.normal(ks[6], (intermediate, hidden), jnp.float32) * (1.0 / jnp.sqrt(intermediate))
        self.ln1_gamma = jnp.ones((hidden,), jnp.float32)
        self.ln2_gamma = jnp.ones((hidden,), jnp.float32)
        self.attn_activations = None   # analog of AttnWrapper.activations

    @staticmethod
    def _rmsnorm(x, g, eps=1e-5):
        var = jnp.mean(x * x, axis=-1, keepdims=True)
        return x * jax.lax.rsqrt(var + eps) * g

    def post_attention_layernorm(self, x):
        return self._rmsnorm(x, self.ln2_gamma)

    def mlp(self, x):
        return (jax.nn.silu(x @ self.w_gate) * (x @ self.w_up)) @ self.w_down

    def _self_attn(self, x, position_ids):
        B, S, H = x.shape
        q = x @ self.wq
        k = x @ self.wk
        v = x @ self.wv
        scores = jnp.einsum("bqh,bkh->bqk", q, k) / jnp.sqrt(jnp.float32(H))
        causal = position_ids[:, :, None] >= position_ids[:, None, :]
        scores = jnp.where(causal, scores, -1e30)
        attn = jax.nn.softmax(scores, axis=-1)
        return jnp.einsum("bqk,bkh->bqh", attn, v) @ self.wo

    def __call__(self, hidden_states, position_ids):
        residual = hidden_states
        h = self._rmsnorm(hidden_states, self.ln1_gamma)
        attn_out = self._self_attn(h, position_ids)
        self.attn_activations = attn_out
        h = residual + attn_out
        residual = h
        h = self.mlp(self.post_attention_layernorm(h))
        return (residual + h,)


# ---------------------------------------------------------------------------
# JAX/Pallas equivalent of BlockOutputWrapper
# ---------------------------------------------------------------------------
class BlockOutputWrapper:
    def __init__(self, block, unembed_w, norm_gamma, tokenizer=None, *,
                 rms_eps=1e-5, decodings_dtype=jnp.bfloat16):
        self.block = block
        self.unembed_w = unembed_w                              # (H, V) f32 reference copy
        H, V = unembed_w.shape
        self.vocab_size = V
        # Cache the streamed weight as bf16, padded ONCE so a lane-dense
        # 256-multiple vocab tile is always legal (e.g. 32000 -> 32000, already
        # a multiple of 256; odd vocabs get padded here instead of per call).
        Vp = _round_up(V, 256)
        w_bf16 = unembed_w.astype(jnp.bfloat16)
        if Vp != V:
            w_bf16 = jnp.pad(w_bf16, ((0, 0), (0, Vp - V)))
        self.unembed_w_bf16 = w_bf16
        self.norm_gamma = norm_gamma                            # (H,)
        self.rms_eps = rms_eps                                  # LLaMA-2 default 1e-5
        self.decodings_dtype = decodings_dtype
        self.tokenizer = tokenizer  # TODO(synk): tokenizer.decode has no Pallas/JAX equivalent; token ids are stored instead.
        self.attn_out_unembedded = None
        self.intermediate_resid_unembedded = None
        self.mlp_out_unembedded = None
        self.block_output_unembedded = None
        self.activations = None
        self.add_activations = None
        self.after_position = None
        self.save_internal_decodings = False
        self.calc_dot_product_with = None
        self.dot_products = []

    # Tiny (1, H) path: plain jnp.  A dedicated pallas_call for a single row
    # is pure launch overhead (1 of 128/256 MXU rows).
    def _unembed_norm_vec(self, x):
        x = x.astype(jnp.float32)
        var = jnp.mean(x * x)
        xn = x * jax.lax.rsqrt(var + self.rms_eps) * self.norm_gamma
        return jnp.dot(xn.astype(jnp.bfloat16), self.unembed_w_bf16,
                       preferred_element_type=jnp.float32)

    def forward(self, hidden_states, position_ids):
        output = self.block(hidden_states, position_ids=position_ids)
        self.activations = output[0]

        if self.calc_dot_product_with is not None:
            last_token_activations = self.activations[0, -1, :]
            decoded = self._unembed_norm_vec(last_token_activations)[: self.vocab_size]
            top_token_id = jnp.argmax(decoded)                             # topk(.,1)[1][0]
            dp = jnp.dot(last_token_activations.astype(jnp.float32),
                         self.calc_dot_product_with.astype(jnp.float32))
            # Keep device arrays: no host sync (int()/float()) inside forward.
            self.dot_products.append((top_token_id, dp))

        if self.add_activations is not None:
            augmented = add_vector_after_position_plus(
                output[0], self.add_activations, position_ids, self.after_position)
            output = (augmented,) + output[1:]

        if not self.save_internal_decodings:
            return output

        block_out = output[0]
        attn_out = self.block.attn_activations
        intermediate = attn_out + hidden_states                 # args[0]
        mlp_out = self.block.mlp(self.block.post_attention_layernorm(intermediate))

        # Batch all four unembed projections into ONE Pallas call (W streamed
        # from HBM once, not four times); jitted so the concat/cast/pad fuse.
        dec = _batched_unembed_decode(block_out, attn_out, intermediate, mlp_out,
                                      self.norm_gamma, self.unembed_w_bf16,
                                      eps=self.rms_eps, out_dtype=self.decodings_dtype)
        if dec.shape[-1] != self.vocab_size:
            dec = dec[..., : self.vocab_size]
        self.block_output_unembedded = dec[0]
        self.attn_out_unembedded = dec[1]
        self.intermediate_resid_unembedded = dec[2]
        self.mlp_out_unembedded = dec[3]
        return output

    def add(self, activations):
        self.add_activations = activations

    def reset(self):
        self.add_activations = None
        self.activations = None
        self.block.attn_activations = None
        self.after_position = None
        self.calc_dot_product_with = None
        self.dot_products = []


# ---------------------------------------------------------------------------
if __name__ == "__main__":
    B, S, H, V, INTER = 2, 8, 128, 256, 256

    key = jax.random.PRNGKey(0)
    k_blk, k_x, k_unembed, k_steer, k_add = jax.random.split(key, 5)

    block = SyntheticLlamaBlock(k_blk, H, INTER)
    unembed_w = jax.random.normal(k_unembed, (H, V), jnp.float32) * (1.0 / jnp.sqrt(H))
    norm_gamma = jnp.ones((H,), jnp.float32)

    wrapper = BlockOutputWrapper(block, unembed_w, norm_gamma)
    wrapper.save_internal_decodings = True
    wrapper.calc_dot_product_with = jax.random.normal(k_steer, (H,), jnp.float32)
    add_vec = jax.random.normal(k_add, (H,), jnp.float32) * 0.1
    wrapper.add(add_vec)
    wrapper.after_position = 3

    hidden_states = jax.random.normal(k_x, (B, S, H), jnp.float32)
    position_ids = jnp.broadcast_to(jnp.arange(S, dtype=jnp.int32), (B, S))

    out = wrapper.forward(hidden_states, position_ids)

    jax.block_until_ready(out[0])
    jax.block_until_ready(wrapper.block_output_unembedded)
    jax.block_until_ready(wrapper.attn_out_unembedded)
    jax.block_until_ready(wrapper.intermediate_resid_unembedded)
    jax.block_until_ready(wrapper.mlp_out_unembedded)

    assert out[0].shape == (B, S, H)
    assert wrapper.block_output_unembedded.shape == (B, S, V)
    assert len(wrapper.dot_products) == 1

    # Correctness: fused masked-add  (x + (pos > after)*v + v)
    mask = (position_ids > 3)[..., None].astype(jnp.float32)
    expected_aug = wrapper.activations + mask * add_vec + add_vec
    assert jnp.allclose(out[0], expected_aug, atol=1e-4, rtol=1e-5)

    # Correctness: RMSNorm + unembed (bf16 activation/weight streams, f32 accumulate)
    def ref_unembed(x3d, gamma, w, eps):
        x = x3d.astype(jnp.float32)
        var = jnp.mean(x * x, axis=-1, keepdims=True)
        xn = x * jax.lax.rsqrt(var + eps) * gamma
        return xn @ w

    ref = ref_unembed(out[0], norm_gamma, unembed_w, wrapper.rms_eps)
    got = wrapper.block_output_unembedded.astype(jnp.float32)
    assert jnp.allclose(got, ref, atol=0.1, rtol=0.1)

    print("KERNEL_OK")
</pallas_src>

<mosaic_0001>
module attributes {stable_mosaic.version = 11 : i64} {
  func.func @_masked_add_kernel(%arg0: i32, %arg1: memref<1xi32, #tpu.memory_space<smem>>, %arg2: memref<16x128xf32, #tpu.memory_space<vmem>>, %arg3: memref<1x128xf32, #tpu.memory_space<vmem>>, %arg4: memref<16x1xi32, #tpu.memory_space<vmem>>, %arg5: memref<16x128xf32, #tpu.memory_space<vmem>>) attributes {dimension_semantics = [#tpu.dimension_semantics<parallel>], iteration_bounds = array<i64: 1>, scalar_prefetch = 1 : i64, scratch_operands = 0 : i64, tpu.core_type = #tpu.core_type<tc>, window_params = [{transform_indices = @transform_0, window_bounds = array<i64: 16, 128>}, {pipeline_mode = #tpu.pipeline_mode<synchronous>, transform_indices = @transform_1, window_bounds = array<i64: 1, 128>}, {transform_indices = @transform_2, window_bounds = array<i64: 16, 1>}, {transform_indices = @transform_3, window_bounds = array<i64: 16, 128>}]} {
    %c0 = arith.constant 0 : index
    %0 = memref.load %arg1[%c0] : memref<1xi32, #tpu.memory_space<smem>>
    %c0_0 = arith.constant 0 : index
    %c0_1 = arith.constant 0 : index
    %1 = vector.load %arg4[%c0_0, %c0_1] : memref<16x1xi32, #tpu.memory_space<vmem>>, vector<16x1xi32>
    %2 = vector.broadcast %0 : i32 to vector<16x1xi32>
    %3 = arith.cmpi sgt, %1, %2 : vector<16x1xi32>
    %cst = arith.constant 2.000000e+00 : f32
    %cst_2 = arith.constant 1.000000e+00 : f32
    %4 = vector.broadcast %cst : f32 to vector<16x1xf32>
    %5 = vector.broadcast %cst_2 : f32 to vector<16x1xf32>
    %6 = arith.select %3, %4, %5 : vector<16x1xi1>, vector<16x1xf32>
    %c0_3 = arith.constant 0 : index
    %c0_4 = arith.constant 0 : index
    %7 = vector.load %arg2[%c0_3, %c0_4] : memref<16x128xf32, #tpu.memory_space<vmem>>, vector<16x128xf32>
    %c0_5 = arith.constant 0 : index
    %c0_6 = arith.constant 0 : index
    %8 = vector.load %arg3[%c0_5, %c0_6] : memref<1x128xf32, #tpu.memory_space<vmem>>, vector<1x128xf32>
    %9 = vector.broadcast %6 : vector<16x1xf32> to vector<16x128xf32>
    %10 = vector.broadcast %8 : vector<1x128xf32> to vector<16x128xf32>
    %11 = arith.mulf %9, %10 : vector<16x128xf32>
    %12 = arith.addf %7, %11 : vector<16x128xf32>
    %c0_7 = arith.constant 0 : index
    %c0_8 = arith.constant 0 : index
    %13 = vector.load %arg5[%c0_7, %c0_8] : memref<16x128xf32, #tpu.memory_space<vmem>>, vector<16x128xf32>
    tpu.vector_store %arg5[%c0_7, %c0_8], %12 {strides = array<i32>} : memref<16x128xf32, #tpu.memory_space<vmem>>, vector<16x128xf32>,
    return
  }
  func.func @transform_0(%arg0: i32, %arg1: memref<1xi32, #tpu.memory_space<smem>>) -> (i32, i32) {
    %c0_i32 = arith.constant 0 : i32
    %c0_i32_0 = arith.constant 0 : i32
    return %arg0, %c0_i32 : i32, i32
  }
  func.func @transform_1(%arg0: i32, %arg1: memref<1xi32, #tpu.memory_space<smem>>) -> (i32, i32) {
    %c0_i32 = arith.constant 0 : i32
    %c0_i32_0 = arith.constant 0 : i32
    %c0_i32_1 = arith.constant 0 : i32
    return %c0_i32, %c0_i32_0 : i32, i32
  }
  func.func @transform_2(%arg0: i32, %arg1: memref<1xi32, #tpu.memory_space<smem>>) -> (i32, i32) {
    %c0_i32 = arith.constant 0 : i32
    %c0_i32_0 = arith.constant 0 : i32
    return %arg0, %c0_i32 : i32, i32
  }
  func.func @transform_3(%arg0: i32, %arg1: memref<1xi32, #tpu.memory_space<smem>>) -> (i32, i32) {
    %c0_i32 = arith.constant 0 : i32
    %c0_i32_0 = arith.constant 0 : i32
    return %arg0, %c0_i32 : i32, i32
  }
}

</mosaic_0001>

<llo_original>
// kernel: _masked_add_plus.1
$region0: #{_masked_add_plus.1}
  #allocation0 [shape = 'u32[]', space=smem, size = 0x4, offset = 0x4, fixed_abs, tag = 'smem constant byte address 0x4 - core index']
  #allocation1 [shape = 'u32[144,128]{1,0:T(1,128)}', space=vmem, size = 0x12000, scoped, tag = 'internal scratch']
  #allocation2 [shape = 's32[1]{0}', space=sflag, size = 0x4, scoped, tag = 'scoped memory for _masked_add_plus.1']
  #allocation3 [shape = 's32[1]{0:T(128)S(6)}', space=smem, size = 0x200, scoped, tag = 'prefetched SMEM operand 0']
  %s0 = inlined_call_operand.<no memory space> [shape: s32[1], index: 0, kind: input, shape index: {}]
  %s1 = inlined_call_operand.vmem [shape: f32[16,128], index: 1, kind: input, shape index: {}]
  %s2 = inlined_call_operand.vmem [shape: f32[1,128], index: 2, kind: input, shape index: {}]
  %s3 = inlined_call_operand.vmem [shape: s32[16,1], index: 3, kind: input, shape index: {}]
  %s4 = inlined_call_operand.hbm [shape: f32[16,128], index: 4, kind: output, shape index: {}]
  %s5 = sld [smem:[#allocation0]]
  $region22: #{_masked_add_plus.1} parent=0
    _
  %s7 = ssub.s32 1, %s5
  %s8 = scalar_select 0, %s7, %s5
  %9 = sst [smem:[#allocation3]] %s0
  $region1: #{_masked_add_plus.1} parent=0
    #allocation4 [shape = 'u8[8192]{0}', space=vmem, size = 0x2000, scoped, tag = 'output window, operand 0, single buffered']
    #allocation5 [shape = 's32[1]{0}', space=sflag, size = 0x4, scoped, tag = 'scoped memory for _masked_add_plus.1']
    %10 = vsyncpa [#allocation5], 0
    // Predicated region
    $region2: #{_masked_add_plus.1} parent=1 // pred_check
      _
    $region3: #{_masked_add_plus.1} parent=1 // pred_check_branch
      %12 = sbr.rel (0) target = $region5
    $region4: #{_masked_add_plus.1} parent=1 // pred_region
      _
    $region5: #{_masked_add_plus.1} parent=1 // pred_fallthru
      _
    // Predicated region
    $region6: #{_masked_add_plus.1} parent=1 // pred_check
      _
    $region7: #{_masked_add_plus.1} parent=1 // pred_check_branch
      %14 = sbr.rel (0) target = $region9
    $region8: #{_masked_add_plus.1} parent=1 // pred_region
      _
    $region9: #{_masked_add_plus.1} parent=1 // pred_fallthru
      _
    // Predicated region
    $region10: #{_masked_add_plus.1} parent=1 // pred_check
      _
    $region11: #{_masked_add_plus.1} parent=1 // pred_check_branch
      %16 = sbr.rel (0) target = $region13
    $region12: #{_masked_add_plus.1} parent=1 // pred_region
      _
    $region13: #{_masked_add_plus.1} parent=1 // pred_fallthru
      _
    %s17 = sld [smem:[#allocation3]]
    %v18 = vld [vmem:[%s3] sm:$0xff]
    %v19 = vld [vmem:[%s3 + $0x8] sm:$0xff]
    %v20 = vstv %s17
    %vm21 = vcmp.gt.s32.totalorder %v18, %v20
    %vm22 = vcmp.gt.s32.totalorder %v19, %v20
    %v23 = vsel %vm21, 2.0, 1.0
    %v24 = vsel %vm22, 2.0, 1.0
    %v25 = vld [vmem:[%s1] sm:$0xff]
    %v26 = vld [vmem:[%s1 + $0x8] sm:$0xff]
    %v27 = vld [vmem:[%s2] sm:$0x1]
    %29 = vset.pattern.permute.xlu0 0
    %30 = vperm.xlu0 %29, %v23
    %v31 = vpop.permute.xlu0 %30
    %34 = vset.pattern.permute.xlu0 0
    %35 = vperm.xlu0 %34, %v24
    %v36 = vpop.permute.xlu0 %35
    %v39 = vlaneseq
    %v40 = vshrl.u32 %v39, 7
    %v41 = vsub.s32 0, %v40
    %v42 = vrot.slane %v27, %v41
    %v44 = vmul.f32 %v31, %v42
    %v45 = vmul.f32 %v36, %v42
    %v46 = vadd.f32 %v25, %v44
    %v47 = vadd.f32 %v26, %v45
    %48 = vst [vmem:[#allocation4] sm:$0xff] %v46
    %49 = vst [vmem:[#allocation4 + $0x8] sm:$0xff] %v47
    // Predicated region
    $region14: #{_masked_add_plus.1} parent=1 // pred_check
      _
    $region15: #{_masked_add_plus.1} parent=1 // pred_check_branch
      %51 = sbr.rel (0) target = $region17
    $region16: #{_masked_add_plus.1} parent=1 // pred_region
      %s53 = ssub.s32 256, 256
      %54 = vsyncadd [#allocation5], %s53
      %s55 = sshll.u32 [#allocation4], 4
      %s56 = int_to_ptr.vmem [resolvable:$true] %s55
      %61 = dma.vmem_to_hbm [thread:$0]  %s56, 256, %s4, [#allocation5], 128, 128, 8
    $region17: #{_masked_add_plus.1} parent=1 // pred_fallthru
      _
    // Predicated region
    $region18: #{_masked_add_plus.1} parent=1 // pred_check
      _
    $region19: #{_masked_add_plus.1} parent=1 // pred_check_branch
      %63 = sbr.rel (0) target = $region21
    $region20: #{_masked_add_plus.1} parent=1 // pred_region
      %64 = dma.done [#allocation5], 256
    $region21: #{_masked_add_plus.1} parent=1 // pred_fallthru
      _
    %65 = vsyncpa [#allocation5], 1

</llo_original>
